<compile_context>
chip_gen: v5e
topology: v5e:2x2
jax: 0.10.0
libtpu: 0.0.40
codegen_flags: <defaults>
</compile_context>

<pallas_src>
import math
from functools import partial

import jax
import jax.numpy as jnp
from jax.experimental import pallas as pl
from jax.experimental.pallas import tpu as pltpu

NUM_INPUTS = 784    # 1 * 28 * 28
NUM_OUTPUTS = 10
N_PAD = 128         # lane width W is padded to (MXU shape only; never hits HBM out)
MAX_TB = 2048       # batch-tile rows; ~13 MiB VMEM/step at f32, fits all gens


def _round_up(x, m):
    return ((x + m - 1) // m) * m


def _linear_kernel(x_ref, w_ref, b_ref, o_ref):
    # x_ref: (TB, K) f32   w_ref: (K, N_PAD) f32   b_ref: (1, N) f32
    # o_ref: (TB, N) f32   (N = NUM_OUTPUTS; narrow masked store, DMA-bound anyway)
    acc = jnp.dot(x_ref[...], w_ref[...], preferred_element_type=jnp.float32)
    o_ref[...] = acc[:, :NUM_OUTPUTS] + b_ref[...]


def prepare_linear_params(w_t, bias):
    """Pad W to 128 lanes and reshape bias to 2-D. Call once (hoisted out of forward)."""
    k, n = w_t.shape
    w_padded = jnp.zeros((k, N_PAD), jnp.float32).at[:, :n].set(
        w_t.astype(jnp.float32))
    b_2d = bias.astype(jnp.float32).reshape(1, n)
    return w_padded, b_2d


@partial(jax.jit, static_argnames=())
def linear_net_forward(x_nchw, w_padded, b_2d):
    """x_nchw: (B, C, H, W) f32; w_padded: (K, 128) f32; b_2d: (1, N) f32 -> (B, N) f32."""
    batch = x_nchw.shape[0]
    # FlattenLayer: x.view(x.shape[0], -1)  (row-major, same as torch .view)
    x_flat = x_nchw.reshape(batch, -1)
    k = x_flat.shape[1]
    n = b_2d.shape[1]

    # Batch tile: multiple of 8 (f32 sublane), capped at MAX_TB. Ragged last
    # tile handled by Pallas (OOB output rows are masked on writeback).
    tb = min(MAX_TB, _round_up(batch, 8))
    grid = (pl.cdiv(batch, tb),)

    out = pl.pallas_call(
        _linear_kernel,
        out_shape=jax.ShapeDtypeStruct((batch, n), jnp.float32),
        grid_spec=pltpu.PrefetchScalarGridSpec(
            num_scalar_prefetch=0,
            grid=grid,
            in_specs=[
                # x: tiled along batch, full K extent (784 == array dim).
                pl.BlockSpec((tb, k), lambda i: (i, 0)),
                # weight/bias: same block every step -> stays VMEM-resident.
                pl.BlockSpec((k, N_PAD), lambda i: (0, 0)),
                pl.BlockSpec((1, n), lambda i: (0, 0)),
            ],
            out_specs=pl.BlockSpec((tb, n), lambda i: (i, 0)),
        ),
        compiler_params=pltpu.CompilerParams(
            dimension_semantics=("parallel",),
            vmem_limit_bytes=32 * 1024 * 1024,
        ),
    )(x_flat, w_padded, b_2d)

    return out


def init_linear_params(key, num_inputs, num_outputs):
    """Deterministic init mimicking torch.nn.Linear default (uniform +-1/sqrt(fan_in))."""
    k_w, k_b = jax.random.split(key)
    bound = 1.0 / math.sqrt(num_inputs)
    # Stored already transposed: (num_inputs, num_outputs)
    w_t = jax.random.uniform(
        k_w, (num_inputs, num_outputs), jnp.float32, minval=-bound, maxval=bound
    )
    b = jax.random.uniform(
        k_b, (num_outputs,), jnp.float32, minval=-bound, maxval=bound
    )
    return w_t, b


if __name__ == "__main__":
    key = jax.random.PRNGKey(0)
    k_x, k_params = jax.random.split(key)

    # Input consistent with num_inputs=784: (batch=2, C=1, H=28, W=28), NCHW.
    x = jax.random.normal(k_x, (2, 1, 28, 28), dtype=jnp.float32)
    w_t, b = init_linear_params(k_params, NUM_INPUTS, NUM_OUTPUTS)

    # Padding/reshape hoisted out of the forward (done once per parameter set).
    w_padded, b_2d = prepare_linear_params(w_t, b)

    y = linear_net_forward(x, w_padded, b_2d)
    y = jax.block_until_ready(y)
    assert y.shape == (2, NUM_OUTPUTS)

    # Reference: exact f32 torch-equivalent math (kernel is f32 end-to-end now).
    x_flat = x.reshape(x.shape[0], -1)
    y_ref = x_flat @ w_t + b
    assert jnp.allclose(y, y_ref, atol=1e-3, rtol=1e-3)

    print("KERNEL_OK")
</pallas_src>

<mosaic_0001>
module attributes {stable_mosaic.version = 11 : i64} {
  func.func @_linear_kernel(%arg0: i32, %arg1: memref<8x784xf32, #tpu.memory_space<vmem>>, %arg2: memref<784x128xf32, #tpu.memory_space<vmem>>, %arg3: memref<1x10xf32, #tpu.memory_space<vmem>>, %arg4: memref<8x10xf32, #tpu.memory_space<vmem>>) attributes {dimension_semantics = [#tpu.dimension_semantics<parallel>], iteration_bounds = array<i64: 1>, scalar_prefetch = 0 : i64, scratch_operands = 0 : i64, tpu.core_type = #tpu.core_type<tc>, window_params = [{transform_indices = @transform_0, window_bounds = array<i64: 8, 784>}, {pipeline_mode = #tpu.pipeline_mode<synchronous>, transform_indices = @transform_1, window_bounds = array<i64: 784, 128>}, {pipeline_mode = #tpu.pipeline_mode<synchronous>, transform_indices = @transform_2, window_bounds = array<i64: 1, 10>}, {transform_indices = @transform_3, window_bounds = array<i64: 8, 10>}]} {
    %c0 = arith.constant 0 : index
    %c0_0 = arith.constant 0 : index
    %0 = vector.load %arg1[%c0, %c0_0] : memref<8x784xf32, #tpu.memory_space<vmem>>, vector<8x784xf32>
    %c0_1 = arith.constant 0 : index
    %c0_2 = arith.constant 0 : index
    %1 = vector.load %arg2[%c0_1, %c0_2] : memref<784x128xf32, #tpu.memory_space<vmem>>, vector<784x128xf32>
    %cst = arith.constant dense<0.000000e+00> : vector<8x128xf32>
    %2 = tpu.matmul %0, %1, %cst {dimension_numbers = #tpu.dot_dimension_numbers<[1], [0], [0], [1], [0, 0, 1, 1], [], []>} : vector<8x784xf32>, vector<784x128xf32>, vector<8x128xf32> -> vector<8x128xf32>
    %3 = vector.extract_strided_slice %2 {offsets = [0, 0], sizes = [8, 10], strides = [1, 1]} : vector<8x128xf32> to vector<8x10xf32>
    %c0_3 = arith.constant 0 : index
    %c0_4 = arith.constant 0 : index
    %4 = vector.load %arg3[%c0_3, %c0_4] : memref<1x10xf32, #tpu.memory_space<vmem>>, vector<1x10xf32>
    %5 = vector.broadcast %4 : vector<1x10xf32> to vector<8x10xf32>
    %6 = arith.addf %3, %5 : vector<8x10xf32>
    %c0_5 = arith.constant 0 : index
    %c0_6 = arith.constant 0 : index
    %7 = vector.load %arg4[%c0_5, %c0_6] : memref<8x10xf32, #tpu.memory_space<vmem>>, vector<8x10xf32>
    tpu.vector_store %arg4[%c0_5, %c0_6], %6 {strides = array<i32>} : memref<8x10xf32, #tpu.memory_space<vmem>>, vector<8x10xf32>,
    return
  }
  func.func @transform_0(%arg0: i32) -> (i32, i32) {
    %c0_i32 = arith.constant 0 : i32
    %c0_i32_0 = arith.constant 0 : i32
    return %arg0, %c0_i32 : i32, i32
  }
  func.func @transform_1(%arg0: i32) -> (i32, i32) {
    %c0_i32 = arith.constant 0 : i32
    %c0_i32_0 = arith.constant 0 : i32
    %c0_i32_1 = arith.constant 0 : i32
    return %c0_i32, %c0_i32_0 : i32, i32
  }
  func.func @transform_2(%arg0: i32) -> (i32, i32) {
    %c0_i32 = arith.constant 0 : i32
    %c0_i32_0 = arith.constant 0 : i32
    %c0_i32_1 = arith.constant 0 : i32
    return %c0_i32, %c0_i32_0 : i32, i32
  }
  func.func @transform_3(%arg0: i32) -> (i32, i32) {
    %c0_i32 = arith.constant 0 : i32
    %c0_i32_0 = arith.constant 0 : i32
    return %arg0, %c0_i32 : i32, i32
  }
}

</mosaic_0001>

<llo_original>
// kernel: linear_net_forward.1
$region0: #{linear_net_forward.1}
  #allocation0 [shape = 'u32[]', space=smem, size = 0x4, offset = 0x4, fixed_abs, tag = 'smem constant byte address 0x4 - core index']
  #allocation1 [shape = 'u32[72,128]{1,0:T(1,128)}', space=vmem, size = 0x9000, scoped, tag = 'internal scratch']
  %s0 = inlined_call_operand.vmem [shape: f32[2,784], index: 0, kind: input, shape index: {}]
  %s1 = inlined_call_operand.hbm [shape: f32[784,128], index: 1, kind: input, shape index: {}]
  %s2 = inlined_call_operand.vmem [shape: f32[1,10], index: 2, kind: input, shape index: {}]
  %s3 = inlined_call_operand.hbm [shape: f32[2,10], index: 3, kind: output, shape index: {}]
  %s4 = sld [smem:[#allocation0]]
  $region26: #{linear_net_forward.1} parent=0
    _
  %s6 = ssub.s32 1, %s4
  %s7 = scalar_select 0, %s6, %s4
  $region1: #{linear_net_forward.1} parent=0
    #allocation2 [shape = 'u8[401408]{0}', space=vmem, size = 0x62000, scoped, tag = 'input window, operand 1, single buffered']
    #allocation3 [shape = 's32[1]{0}', space=sflag, size = 0x4, scoped, tag = 'scoped memory for linear_net_forward.1']
    #allocation4 [shape = 's32[1]{0}', space=sflag, size = 0x4, scoped, tag = 'scoped memory for linear_net_forward.1']
    #allocation5 [shape = 'u8[4096]{0}', space=vmem, size = 0x1000, scoped, tag = 'output window, operand 0, single buffered']
    %8 = vsyncpa [#allocation3], 0
    %9 = vsyncpa [#allocation4], 0
    // Predicated region
    $region2: #{linear_net_forward.1} parent=1 // pred_check
      _
    $region3: #{linear_net_forward.1} parent=1 // pred_check_branch
      %11 = sbr.rel (0) target = $region5
    $region4: #{linear_net_forward.1} parent=1 // pred_region
      _
    $region5: #{linear_net_forward.1} parent=1 // pred_fallthru
      _
    // Predicated region
    $region6: #{linear_net_forward.1} parent=1 // pred_check
      _
    $region7: #{linear_net_forward.1} parent=1 // pred_check_branch
      %13 = sbr.rel (0) target = $region9
    $region8: #{linear_net_forward.1} parent=1 // pred_region
      %15 = vsyncadd [#allocation3], 0
      %s16 = sshll.u32 %s1, 4
      %s17 = int_to_ptr.hbm [resolvable:$true] %s16
      %s18 = sshll.u32 [#allocation2], 4
      %s19 = int_to_ptr.vmem [resolvable:$true] %s18
      %24 = dma.hbm_to_vmem [thread:$0]  %s17, 12544, %s19, [#allocation3], 128, 128, 8
    $region9: #{linear_net_forward.1} parent=1 // pred_fallthru
      _
    // Predicated region
    $region10: #{linear_net_forward.1} parent=1 // pred_check
      _
    $region11: #{linear_net_forward.1} parent=1 // pred_check_branch
      %26 = sbr.rel (0) target = $region13
    $region12: #{linear_net_forward.1} parent=1 // pred_region
      _
    $region13: #{linear_net_forward.1} parent=1 // pred_fallthru
      _
    // Predicated region
    $region14: #{linear_net_forward.1} parent=1 // pred_check
      _
    $region15: #{linear_net_forward.1} parent=1 // pred_check_branch
      %28 = sbr.rel (0) target = $region17
    $region16: #{linear_net_forward.1} parent=1 // pred_region
      %30 = dma.done [#allocation3], 12544
    $region17: #{linear_net_forward.1} parent=1 // pred_fallthru
      _
    %v31 = vld [vmem:[%s0] sm:$0xff]
    %v32 = vld [vmem:[%s0 + $0x8] sm:$0x3f]
    %v33 = vld [vmem:[%s0 + $0xe] sm:$0xff]
    %v34 = vld [vmem:[%s0 + $0x16] sm:$0x3f]
    %v35 = vld [vmem:[%s0 + $0x1c] sm:$0xff]
    %v36 = vld [vmem:[%s0 + $0x24] sm:$0x3f]
    %v37 = vld [vmem:[%s0 + $0x2a] sm:$0xff]
    %v38 = vld [vmem:[%s0 + $0x32] sm:$0x3f]
    %v39 = vld [vmem:[#allocation2] sm:$0xff]
    %v40 = vld [vmem:[#allocation2 + $0x8] sm:$0xff]
    %v41 = vld [vmem:[#allocation2 + $0x10] sm:$0xff]
    %v42 = vld [vmem:[#allocation2 + $0x18] sm:$0xff]
    %v43 = vld [vmem:[#allocation2 + $0x20] sm:$0xff]
    %v44 = vld [vmem:[#allocation2 + $0x28] sm:$0xff]
    %v45 = vld [vmem:[#allocation2 + $0x30] sm:$0xff]
    %v46 = vld [vmem:[#allocation2 + $0x38] sm:$0xff]
    %v47 = vld [vmem:[#allocation2 + $0x40] sm:$0xff]
    %v48 = vld [vmem:[#allocation2 + $0x48] sm:$0xff]
    %v49 = vld [vmem:[#allocation2 + $0x50] sm:$0xff]
    %v50 = vld [vmem:[#allocation2 + $0x58] sm:$0xff]
    %v51 = vld [vmem:[#allocation2 + $0x60] sm:$0xff]
    %v52 = vld [vmem:[#allocation2 + $0x68] sm:$0xff]
    %v53 = vld [vmem:[#allocation2 + $0x70] sm:$0xff]
    %v54 = vld [vmem:[#allocation2 + $0x78] sm:$0xff]
    %v55 = vld [vmem:[#allocation2 + $0x80] sm:$0xff]
    %v56 = vld [vmem:[#allocation2 + $0x88] sm:$0xff]
    %v57 = vld [vmem:[#allocation2 + $0x90] sm:$0xff]
    %v58 = vld [vmem:[#allocation2 + $0x98] sm:$0xff]
    %v59 = vld [vmem:[#allocation2 + $0xa0] sm:$0xff]
    %v60 = vld [vmem:[#allocation2 + $0xa8] sm:$0xff]
    %v61 = vld [vmem:[#allocation2 + $0xb0] sm:$0xff]
    %v62 = vld [vmem:[#allocation2 + $0xb8] sm:$0xff]
    %v63 = vld [vmem:[#allocation2 + $0xc0] sm:$0xff]
    %v64 = vld [vmem:[#allocation2 + $0xc8] sm:$0xff]
    %v65 = vld [vmem:[#allocation2 + $0xd0] sm:$0xff]
    %v66 = vld [vmem:[#allocation2 + $0xd8] sm:$0xff]
    %v67 = vld [vmem:[#allocation2 + $0xe0] sm:$0xff]
    %v68 = vld [vmem:[#allocation2 + $0xe8] sm:$0xff]
    %v69 = vld [vmem:[#allocation2 + $0xf0] sm:$0xff]
    %v70 = vld [vmem:[#allocation2 + $0xf8] sm:$0xff]
    %v71 = vld [vmem:[#allocation2 + $0x100] sm:$0xff]
    %v72 = vld [vmem:[#allocation2 + $0x108] sm:$0xff]
    %v73 = vld [vmem:[#allocation2 + $0x110] sm:$0xff]
    %v74 = vld [vmem:[#allocation2 + $0x118] sm:$0xff]
    %v75 = vld [vmem:[#allocation2 + $0x120] sm:$0xff]
    %v76 = vld [vmem:[#allocation2 + $0x128] sm:$0xff]
    %v77 = vld [vmem:[#allocation2 + $0x130] sm:$0xff]
    %v78 = vld [vmem:[#allocation2 + $0x138] sm:$0xff]
    %v79 = vld [vmem:[#allocation2 + $0x140] sm:$0xff]
    %v80 = vld [vmem:[#allocation2 + $0x148] sm:$0xff]
    %v81 = vld [vmem:[#allocation2 + $0x150] sm:$0xff]
    %v82 = vld [vmem:[#allocation2 + $0x158] sm:$0xff]
    %v83 = vld [vmem:[#allocation2 + $0x160] sm:$0xff]
    %v84 = vld [vmem:[#allocation2 + $0x168] sm:$0xff]
    %v85 = vld [vmem:[#allocation2 + $0x170] sm:$0xff]
    %v86 = vld [vmem:[#allocation2 + $0x178] sm:$0xff]
    %v87 = vld [vmem:[#allocation2 + $0x180] sm:$0xff]
    %v88 = vld [vmem:[#allocation2 + $0x188] sm:$0xff]
    %v89 = vld [vmem:[#allocation2 + $0x190] sm:$0xff]
    %v90 = vld [vmem:[#allocation2 + $0x198] sm:$0xff]
    %v91 = vld [vmem:[#allocation2 + $0x1a0] sm:$0xff]
    %v92 = vld [vmem:[#allocation2 + $0x1a8] sm:$0xff]
    %v93 = vld [vmem:[#allocation2 + $0x1b0] sm:$0xff]
    %v94 = vld [vmem:[#allocation2 + $0x1b8] sm:$0xff]
    %v95 = vld [vmem:[#allocation2 + $0x1c0] sm:$0xff]
    %v96 = vld [vmem:[#allocation2 + $0x1c8] sm:$0xff]
    %v97 = vld [vmem:[#allocation2 + $0x1d0] sm:$0xff]
    %v98 = vld [vmem:[#allocation2 + $0x1d8] sm:$0xff]
    %v99 = vld [vmem:[#allocation2 + $0x1e0] sm:$0xff]
    %v100 = vld [vmem:[#allocation2 + $0x1e8] sm:$0xff]
    %v101 = vld [vmem:[#allocation2 + $0x1f0] sm:$0xff]
    %v102 = vld [vmem:[#allocation2 + $0x1f8] sm:$0xff]
    %v103 = vld [vmem:[#allocation2 + $0x200] sm:$0xff]
    %v104 = vld [vmem:[#allocation2 + $0x208] sm:$0xff]
    %v105 = vld [vmem:[#allocation2 + $0x210] sm:$0xff]
    %v106 = vld [vmem:[#allocation2 + $0x218] sm:$0xff]
    %v107 = vld [vmem:[#allocation2 + $0x220] sm:$0xff]
    %v108 = vld [vmem:[#allocation2 + $0x228] sm:$0xff]
    %v109 = vld [vmem:[#allocation2 + $0x230] sm:$0xff]
    %v110 = vld [vmem:[#allocation2 + $0x238] sm:$0xff]
    %v111 = vld [vmem:[#allocation2 + $0x240] sm:$0xff]
    %v112 = vld [vmem:[#allocation2 + $0x248] sm:$0xff]
    %v113 = vld [vmem:[#allocation2 + $0x250] sm:$0xff]
    %v114 = vld [vmem:[#allocation2 + $0x258] sm:$0xff]
    %v115 = vld [vmem:[#allocation2 + $0x260] sm:$0xff]
    %v116 = vld [vmem:[#allocation2 + $0x268] sm:$0xff]
    %v117 = vld [vmem:[#allocation2 + $0x270] sm:$0xff]
    %v118 = vld [vmem:[#allocation2 + $0x278] sm:$0xff]
    %v119 = vld [vmem:[#allocation2 + $0x280] sm:$0xff]
    %v120 = vld [vmem:[#allocation2 + $0x288] sm:$0xff]
    %v121 = vld [vmem:[#allocation2 + $0x290] sm:$0xff]
    %v122 = vld [vmem:[#allocation2 + $0x298] sm:$0xff]
    %v123 = vld [vmem:[#allocation2 + $0x2a0] sm:$0xff]
    %v124 = vld [vmem:[#allocation2 + $0x2a8] sm:$0xff]
    %v125 = vld [vmem:[#allocation2 + $0x2b0] sm:$0xff]
    %v126 = vld [vmem:[#allocation2 + $0x2b8] sm:$0xff]
    %v127 = vld [vmem:[#allocation2 + $0x2c0] sm:$0xff]
    %v128 = vld [vmem:[#allocation2 + $0x2c8] sm:$0xff]
    %v129 = vld [vmem:[#allocation2 + $0x2d0] sm:$0xff]
    %v130 = vld [vmem:[#allocation2 + $0x2d8] sm:$0xff]
    %v131 = vld [vmem:[#allocation2 + $0x2e0] sm:$0xff]
    %v132 = vld [vmem:[#allocation2 + $0x2e8] sm:$0xff]
    %v133 = vld [vmem:[#allocation2 + $0x2f0] sm:$0xff]
    %v134 = vld [vmem:[#allocation2 + $0x2f8] sm:$0xff]
    %v135 = vld [vmem:[#allocation2 + $0x300] sm:$0xff]
    %v136 = vld [vmem:[#allocation2 + $0x308] sm:$0xff]
    %145 = vst [vmem:[#allocation1] ss:$4 sm:$0xff] %v31
    %s146 = scalar_lea.vmem [#allocation1], 1
    %147 = vst [vmem:[%s146] ss:$4 sm:$0xff] %v33
    %s148 = scalar_lea.vmem [#allocation1], 2
    %149 = vst [vmem:[%s148] ss:$4 sm:$0xff] %v35
    %s150 = scalar_lea.vmem [#allocation1], 3
    %151 = vst [vmem:[%s150] ss:$4 sm:$0xff] %v37
    %s152 = scalar_lea.vmem [#allocation1], 32
    %153 = vst [vmem:[%s152] ss:$4 sm:$0xff] %v32
    %s154 = scalar_lea.vmem [#allocation1], 33
    %155 = vst [vmem:[%s154] ss:$4 sm:$0xff] %v34
    %s156 = scalar_lea.vmem [#allocation1], 34
    %157 = vst [vmem:[%s156] ss:$4 sm:$0xff] %v36
    %s158 = scalar_lea.vmem [#allocation1], 35
    %159 = vst [vmem:[%s158] ss:$4 sm:$0xff] %v38
    %v160 = vld.sshfl [vmem:[#allocation1] sm:$0xff pattern:$0x73625140]
    %v161 = vld.sshfl [vmem:[#allocation1 + $0x8] sm:$0xff pattern:$0x73625140]
    %v162 = vld.sshfl [vmem:[#allocation1 + $0x10] sm:$0xff pattern:$0x73625140]
    %v163 = vld.sshfl [vmem:[#allocation1 + $0x18] sm:$0xff pattern:$0x73625140]
    %v164 = vld.sshfl [vmem:[#allocation1 + $0x20] sm:$0xff pattern:$0x73625140]
    %v165 = vld.sshfl [vmem:[#allocation1 + $0x28] sm:$0xff pattern:$0x73625140]
    %v166 = vld.sshfl [vmem:[#allocation1 + $0x30] sm:$0xff pattern:$0x73625140]
    %vm173 = vcmask 130048
    %v174 = vsel %vm173, %v166, 0
    %176 = vmatpush.msra.mxu0 %v54
    %177 = vmatpush.msra.mxu0 %v53
    %178 = vmatpush.msra.mxu0 %v52
    %179 = vmatpush.msra.mxu0 %v51
    %180 = vmatpush.msra.mxu0 %v50
    %181 = vmatpush.msra.mxu0 %v49
    %182 = vmatpush.msra.mxu0 %v48
    %183 = vmatpush.msra.mxu0 %v47
    %184 = vmatpush.msra.mxu0 %v46
    %185 = vmatpush.msra.mxu0 %v45
    %186 = vmatpush.msra.mxu0 %v44
    %187 = vmatpush.msra.mxu0 %v43
    %188 = vmatpush.msra.mxu0 %v42
    %189 = vmatpush.msra.mxu0 %v41
    %190 = vmatpush.msra.mxu0 %v40
    %191 = vmatpush.msra.mxu0 %v39
    %192 = vmatmul.f32.gmra.mxu0 %v160
    %v193 = vpop.f32.mrf.mxu0
    %v194 = vadd.f32 0.0, %v193
    %195 = vdwg.mxu0
    %196 = vmatpush.msra.mxu0 %v70
    %197 = vmatpush.msra.mxu0 %v69
    %198 = vmatpush.msra.mxu0 %v68
    %199 = vmatpush.msra.mxu0 %v67
    %200 = vmatpush.msra.mxu0 %v66
    %201 = vmatpush.msra.mxu0 %v65
    %202 = vmatpush.msra.mxu0 %v64
    %203 = vmatpush.msra.mxu0 %v63
    %204 = vmatpush.msra.mxu0 %v62
    %205 = vmatpush.msra.mxu0 %v61
    %206 = vmatpush.msra.mxu0 %v60
    %207 = vmatpush.msra.mxu0 %v59
    %208 = vmatpush.msra.mxu0 %v58
    %209 = vmatpush.msra.mxu0 %v57
    %210 = vmatpush.msra.mxu0 %v56
    %211 = vmatpush.msra.mxu0 %v55
    %212 = vmatmul.f32.gmra.mxu0 %v161
    %v213 = vpop.f32.mrf.mxu0
    %v214 = vadd.f32 %v194, %v213
    %215 = vdwg.mxu0
    %216 = vmatpush.msra.mxu0 %v86
    %217 = vmatpush.msra.mxu0 %v85
    %218 = vmatpush.msra.mxu0 %v84
    %219 = vmatpush.msra.mxu0 %v83
    %220 = vmatpush.msra.mxu0 %v82
    %221 = vmatpush.msra.mxu0 %v81
    %222 = vmatpush.msra.mxu0 %v80
    %223 = vmatpush.msra.mxu0 %v79
    %224 = vmatpush.msra.mxu0 %v78
    %225 = vmatpush.msra.mxu0 %v77
    %226 = vmatpush.msra.mxu0 %v76
    %227 = vmatpush.msra.mxu0 %v75
    %228 = vmatpush.msra.mxu0 %v74
    %229 = vmatpush.msra.mxu0 %v73
    %230 = vmatpush.msra.mxu0 %v72
    %231 = vmatpush.msra.mxu0 %v71
    %232 = vmatmul.f32.gmra.mxu0 %v162
    %v233 = vpop.f32.mrf.mxu0
    %v234 = vadd.f32 %v214, %v233
    %235 = vdwg.mxu0
    %236 = vmatpush.msra.mxu0 %v102
    %237 = vmatpush.msra.mxu0 %v101
    %238 = vmatpush.msra.mxu0 %v100
    %239 = vmatpush.msra.mxu0 %v99
    %240 = vmatpush.msra.mxu0 %v98
    %241 = vmatpush.msra.mxu0 %v97
    %242 = vmatpush.msra.mxu0 %v96
    %243 = vmatpush.msra.mxu0 %v95
    %244 = vmatpush.msra.mxu0 %v94
    %245 = vmatpush.msra.mxu0 %v93
    %246 = vmatpush.msra.mxu0 %v92
    %247 = vmatpush.msra.mxu0 %v91
    %248 = vmatpush.msra.mxu0 %v90
    %249 = vmatpush.msra.mxu0 %v89
    %250 = vmatpush.msra.mxu0 %v88
    %251 = vmatpush.msra.mxu0 %v87
    %252 = vmatmul.f32.gmra.mxu0 %v163
    %v253 = vpop.f32.mrf.mxu0
    %v254 = vadd.f32 %v234, %v253
    %255 = vdwg.mxu0
    %256 = vmatpush.msra.mxu0 %v118
    %257 = vmatpush.msra.mxu0 %v117
    %258 = vmatpush.msra.mxu0 %v116
    %259 = vmatpush.msra.mxu0 %v115
    %260 = vmatpush.msra.mxu0 %v114
    %261 = vmatpush.msra.mxu0 %v113
    %262 = vmatpush.msra.mxu0 %v112
    %263 = vmatpush.msra.mxu0 %v111
    %264 = vmatpush.msra.mxu0 %v110
    %265 = vmatpush.msra.mxu0 %v109
    %266 = vmatpush.msra.mxu0 %v108
    %267 = vmatpush.msra.mxu0 %v107
    %268 = vmatpush.msra.mxu0 %v106
    %269 = vmatpush.msra.mxu0 %v105
    %270 = vmatpush.msra.mxu0 %v104
    %271 = vmatpush.msra.mxu0 %v103
    %272 = vmatmul.f32.gmra.mxu0 %v164
    %v273 = vpop.f32.mrf.mxu0
    %v274 = vadd.f32 %v254, %v273
    %275 = vdwg.mxu0
    %276 = vmatpush.msra.mxu0 %v134
    %277 = vmatpush.msra.mxu0 %v133
    %278 = vmatpush.msra.mxu0 %v132
    %279 = vmatpush.msra.mxu0 %v131
    %280 = vmatpush.msra.mxu0 %v130
    %281 = vmatpush.msra.mxu0 %v129
    %282 = vmatpush.msra.mxu0 %v128
    %283 = vmatpush.msra.mxu0 %v127
    %284 = vmatpush.msra.mxu0 %v126
    %285 = vmatpush.msra.mxu0 %v125
    %286 = vmatpush.msra.mxu0 %v124
    %287 = vmatpush.msra.mxu0 %v123
    %288 = vmatpush.msra.mxu0 %v122
    %289 = vmatpush.msra.mxu0 %v121
    %290 = vmatpush.msra.mxu0 %v120
    %291 = vmatpush.msra.mxu0 %v119
    %292 = vmatmul.f32.gmra.mxu0 %v165
    %v293 = vpop.f32.mrf.mxu0
    %v294 = vadd.f32 %v274, %v293
    %295 = vdwg.mxu0
    %296 = vmatpush.msra.mxu0 0.0
    %297 = vmatpush.msra.mxu0 0.0
    %298 = vmatpush.msra.mxu0 0.0
    %299 = vmatpush.msra.mxu0 0.0
    %300 = vmatpush.msra.mxu0 0.0
    %301 = vmatpush.msra.mxu0 0.0
    %302 = vmatpush.msra.mxu0 0.0
    %303 = vmatpush.msra.mxu0 0.0
    %304 = vmatpush.msra.mxu0 0.0
    %305 = vmatpush.msra.mxu0 0.0
    %306 = vmatpush.msra.mxu0 0.0
    %307 = vmatpush.msra.mxu0 0.0
    %308 = vmatpush.msra.mxu0 0.0
    %309 = vmatpush.msra.mxu0 0.0
    %310 = vmatpush.msra.mxu0 %v136
    %311 = vmatpush.msra.mxu0 %v135
    %312 = vmatmul.f32.gmra.mxu0 %v174
    %v313 = vpop.f32.mrf.mxu0
    %v314 = vadd.f32 %v294, %v313
    %315 = vdwg.mxu0
    %v316 = vld [vmem:[%s2] sm:$0x1]
    %v318 = vperm.slane %v316, 0
    %v320 = vadd.f32 %v314, %v318
    %vm321 = vcmask 80896
    %322 = vst.msk [vmem:[#allocation5] sm:$0xff] %vm321, %v320
    // Predicated region
    $region18: #{linear_net_forward.1} parent=1 // pred_check
      _
    $region19: #{linear_net_forward.1} parent=1 // pred_check_branch
      %324 = sbr.rel (0) target = $region21
    $region20: #{linear_net_forward.1} parent=1 // pred_region
      %326 = vsyncadd [#allocation4], 96
      %s327 = sshll.u32 [#allocation5], 4
      %s328 = int_to_ptr.vmem [resolvable:$true] %s327
      %s329 = sshll.u32 %s3, 4
      %s330 = int_to_ptr.hbm [resolvable:$true] %s329
      %335 = dma.vmem_to_hbm [thread:$0]  %s328, 32, %s330, [#allocation4], 32, 32, 2
    $region21: #{linear_net_forward.1} parent=1 // pred_fallthru
      _
    // Predicated region
    $region22: #{linear_net_forward.1} parent=1 // pred_check
      _
    $region23: #{linear_net_forward.1} parent=1 // pred_check_branch
      %337 = sbr.rel (0) target = $region25
    $region24: #{linear_net_forward.1} parent=1 // pred_region
      %339 = dma.done [#allocation4], 128
    $region25: #{linear_net_forward.1} parent=1 // pred_fallthru
      _
    %340 = vsyncpa [#allocation3], 1
    %341 = vsyncpa [#allocation4], 1

</llo_original>
